<compile_context>
chip_gen: v7x
topology: tpu7x:2x2x1
jax: 0.10.0
libtpu: 0.0.40
codegen_flags: <defaults>
</compile_context>

<pallas_src>
import jax
import jax.numpy as jnp
from jax.experimental import pallas as pl
from jax.experimental.pallas import tpu as pltpu


def mnl_kernel(e_ref, diag_ref, softmax_ref, scaled_ref):
    e = e_ref[...]                       # (TB, Np)
    d = diag_ref[...]                    # (1, Np) -> broadcast over rows
    mask = e == jnp.float32(1.0)

    # DiagonalLinear: x @ diag(d) == column-wise scale (VPU only, no MXU).
    scaled = e * d
    masked = jnp.where(mask, scaled, jnp.float32(-jnp.inf))

    # Numerically stable softmax along the lane axis (exact normalization:
    # the kernel is HBM-bound, so the divide costs nothing and keeps rows
    # summing to 1 to full f32 precision).
    m = jnp.max(masked, axis=-1, keepdims=True)
    p = jnp.exp(masked - m)
    s = jnp.sum(p, axis=-1, keepdims=True)
    softmax_ref[...] = (p / s).astype(softmax_ref.dtype)
    scaled_ref[...] = scaled.astype(scaled_ref.dtype)


def _pick_tile_b(padded_B, padded_N, itemsize, *,
                 vmem_budget_bytes=4 << 20, prefer_min_grid=8):
    """Pick a sublane-aligned row tile that divides the padded batch:
       (a) double-buffered working set (e tile + 2 output tiles, x2 buffers)
           stays under `vmem_budget_bytes`,
       (b) prefer tiles that leave >= `prefer_min_grid` grid steps so that
           after a 2-way core split (v7x) each core still pipelines >=4 steps.
    padded_B is a multiple of 8, so a valid tile always exists (tile_b=8)."""
    bytes_per_row = 2 * 3 * padded_N * itemsize     # 2 bufs x (1 in + 2 out)
    cap_rows = max(8, ((vmem_budget_bytes // bytes_per_row) // 8) * 8)
    best_fit = None
    for tb in range(min(padded_B, cap_rows), 0, -8):
        if padded_B % tb:
            continue
        if best_fit is None:
            best_fit = tb                 # largest tile under the budget
        if padded_B // tb >= prefer_min_grid:
            return tb                     # largest tile that still gives >= prefer_min_grid steps
    return best_fit


def mnl_forward(e, diag, *, tile_b=None):
    B, N = e.shape
    itemsize = jnp.dtype(e.dtype).itemsize

    # Pad rows to a multiple of 8 (sublanes) and options to a multiple of 128
    # (lanes) so every block is tileable and output stores are lane-dense.
    # Padded columns have e == 0 -> mask False -> -inf -> no softmax weight.
    # Padded rows are garbage (all -inf) and are sliced off below.
    pad_b = (-B) % 8
    pad_n = (-N) % 128
    Bp, Np = B + pad_b, N + pad_n
    e_p = jnp.pad(e, ((0, pad_b), (0, pad_n))) if (pad_b or pad_n) else e
    diag_p = jnp.pad(diag, (0, pad_n), constant_values=1.0) if pad_n else diag
    diag2d = diag_p.reshape(1, Np)

    if tile_b is None:
        tile_b = _pick_tile_b(Bp, Np, itemsize)
    assert Bp % tile_b == 0, f"tile_b={tile_b} must divide padded B={Bp}"

    out_shape = (
        jax.ShapeDtypeStruct((Bp, Np), e.dtype),   # masked softmax
        jax.ShapeDtypeStruct((Bp, Np), e.dtype),   # scaled e
    )
    soft, scaled = pl.pallas_call(
        mnl_kernel,
        out_shape=out_shape,
        grid_spec=pl.GridSpec(
            grid=(Bp // tile_b,),
            in_specs=[
                pl.BlockSpec((tile_b, Np), lambda i: (i, 0)),
                # Constant block index -> diag tile stays resident in VMEM.
                pl.BlockSpec((1, Np), lambda i: (0, 0)),
            ],
            out_specs=[
                pl.BlockSpec((tile_b, Np), lambda i: (i, 0)),
                pl.BlockSpec((tile_b, Np), lambda i: (i, 0)),
            ],
        ),
        compiler_params=pltpu.CompilerParams(
            dimension_semantics=("parallel",),
        ),
    )(e_p, diag2d)

    if pad_b or pad_n:
        soft = soft[:B, :N]
        scaled = scaled[:B, :N]
    return soft, scaled


def mnl_reference(e, diag):
    mask = e == 1.0
    scaled = e * diag[None, :]
    masked = jnp.where(mask, scaled, -jnp.inf)
    return jax.nn.softmax(masked, axis=-1), scaled


if __name__ == "__main__":
    # Small shapes; B and OptSize deliberately NOT multiples of (8, 128) so the
    # padding path is exercised too.
    B, OptSize = 20, 48
    key = jax.random.PRNGKey(0)
    k_e, k_mask, k_diag = jax.random.split(key, 3)

    # Deterministic parameter for DiagonalLinear (shape = (OptSize,), per __init__).
    diag = jax.random.normal(k_diag, (OptSize,), dtype=jnp.float32) * 0.1 + 1.0

    # Input: random values with a deterministic subset set exactly to 1.0 so the
    # `e == 1` mask is non-trivial; first column forced to 1 so no row is all -inf.
    e = jax.random.normal(k_e, (B, OptSize), dtype=jnp.float32)
    one_mask = jax.random.bernoulli(k_mask, 0.3, (B, OptSize))
    e = jnp.where(one_mask, 1.0, e)
    e = e.at[:, 0].set(1.0)

    soft, scaled = mnl_forward(e, diag)
    jax.block_until_ready((soft, scaled))

    soft_ref, scaled_ref = mnl_reference(e, diag)
    assert jnp.allclose(scaled, scaled_ref, atol=1e-6), "scaled output mismatch"
    assert jnp.allclose(soft, soft_ref, rtol=1e-4, atol=1e-6), "softmax output mismatch"

    print("KERNEL_OK")
</pallas_src>

<mosaic_0001>
module attributes {stable_mosaic.version = 11 : i64} {
  func.func @mnl_kernel(%arg0: i32, %arg1: memref<24x128xf32, #tpu.memory_space<vmem>>, %arg2: memref<1x128xf32, #tpu.memory_space<vmem>>, %arg3: memref<24x128xf32, #tpu.memory_space<vmem>>, %arg4: memref<24x128xf32, #tpu.memory_space<vmem>>) attributes {dimension_semantics = [#tpu.dimension_semantics<parallel>], iteration_bounds = array<i64: 1>, scalar_prefetch = 0 : i64, scratch_operands = 0 : i64, tpu.core_type = #tpu.core_type<tc>, window_params = [{transform_indices = @transform_0, window_bounds = array<i64: 24, 128>}, {pipeline_mode = #tpu.pipeline_mode<synchronous>, transform_indices = @transform_1, window_bounds = array<i64: 1, 128>}, {transform_indices = @transform_2, window_bounds = array<i64: 24, 128>}, {transform_indices = @transform_3, window_bounds = array<i64: 24, 128>}]} {
    %c0 = arith.constant 0 : index
    %c0_0 = arith.constant 0 : index
    %0 = vector.load %arg1[%c0, %c0_0] : memref<24x128xf32, #tpu.memory_space<vmem>>, vector<24x128xf32>
    %c0_1 = arith.constant 0 : index
    %c0_2 = arith.constant 0 : index
    %1 = vector.load %arg2[%c0_1, %c0_2] : memref<1x128xf32, #tpu.memory_space<vmem>>, vector<1x128xf32>
    %cst = arith.constant 1.000000e+00 : f32
    %2 = vector.broadcast %cst : f32 to vector<24x128xf32>
    %3 = arith.cmpf oeq, %0, %2 : vector<24x128xf32>
    %4 = vector.broadcast %1 : vector<1x128xf32> to vector<24x128xf32>
    %5 = arith.mulf %0, %4 : vector<24x128xf32>
    %cst_3 = arith.constant 0xFF800000 : f32
    %6 = vector.broadcast %cst_3 : f32 to vector<24x128xf32>
    %7 = arith.select %3, %5, %6 : vector<24x128xi1>, vector<24x128xf32>
    %cst_4 = arith.constant dense<0xFF800000> : vector<24xf32>
    %8 = vector.multi_reduction <maximumf>, %7, %cst_4 [1] : vector<24x128xf32> to vector<24xf32>
    %9 = vector.shape_cast %8 : vector<24xf32> to vector<24x1xf32>
    %10 = vector.broadcast %9 : vector<24x1xf32> to vector<24x128xf32>
    %11 = arith.subf %7, %10 : vector<24x128xf32>
    %12 = math.exp %11 : vector<24x128xf32>
    %cst_5 = arith.constant dense<0.000000e+00> : vector<24xf32>
    %13 = vector.multi_reduction <add>, %12, %cst_5 [1] : vector<24x128xf32> to vector<24xf32>
    %14 = vector.shape_cast %13 : vector<24xf32> to vector<24x1xf32>
    %15 = vector.broadcast %14 : vector<24x1xf32> to vector<24x128xf32>
    %16 = arith.divf %12, %15 : vector<24x128xf32>
    %c0_6 = arith.constant 0 : index
    %c0_7 = arith.constant 0 : index
    %17 = vector.load %arg3[%c0_6, %c0_7] : memref<24x128xf32, #tpu.memory_space<vmem>>, vector<24x128xf32>
    tpu.vector_store %arg3[%c0_6, %c0_7], %16 {strides = array<i32>} : memref<24x128xf32, #tpu.memory_space<vmem>>, vector<24x128xf32>,
    %c0_8 = arith.constant 0 : index
    %c0_9 = arith.constant 0 : index
    %18 = vector.load %arg4[%c0_8, %c0_9] : memref<24x128xf32, #tpu.memory_space<vmem>>, vector<24x128xf32>
    tpu.vector_store %arg4[%c0_8, %c0_9], %5 {strides = array<i32>} : memref<24x128xf32, #tpu.memory_space<vmem>>, vector<24x128xf32>,
    return
  }
  func.func @transform_0(%arg0: i32) -> (i32, i32) {
    %c0_i32 = arith.constant 0 : i32
    %c0_i32_0 = arith.constant 0 : i32
    return %arg0, %c0_i32 : i32, i32
  }
  func.func @transform_1(%arg0: i32) -> (i32, i32) {
    %c0_i32 = arith.constant 0 : i32
    %c0_i32_0 = arith.constant 0 : i32
    %c0_i32_1 = arith.constant 0 : i32
    return %c0_i32, %c0_i32_0 : i32, i32
  }
  func.func @transform_2(%arg0: i32) -> (i32, i32) {
    %c0_i32 = arith.constant 0 : i32
    %c0_i32_0 = arith.constant 0 : i32
    return %arg0, %c0_i32 : i32, i32
  }
  func.func @transform_3(%arg0: i32) -> (i32, i32) {
    %c0_i32 = arith.constant 0 : i32
    %c0_i32_0 = arith.constant 0 : i32
    return %arg0, %c0_i32 : i32, i32
  }
}

</mosaic_0001>

<llo_original>
// kernel: tpu_custom_call.1
$region0: #{tpu_custom_call.1}
  #allocation0 [shape = 'u32[]', space=smem, size = 0x4, offset = 0x4, fixed_abs, tag = 'smem constant byte address 0x4 - core index']
  #allocation1 [shape = 'u32[144,128]{1,0:T(1,128)}', space=vmem, size = 0x12000, scoped, tag = 'internal scratch']
  %s0 = inlined_call_operand.hbm [shape: f32[24,128], index: 0, kind: input, shape index: {}]
  %s1 = inlined_call_operand.vmem [shape: f32[1,128], index: 1, kind: input, shape index: {}]
  %s2 = inlined_call_operand.hbm [shape: f32[24,128], index: 2, kind: output, shape index: {0}]
  %s3 = inlined_call_operand.hbm [shape: f32[24,128], index: 3, kind: output, shape index: {1}]
  %4 = xla_tuple %s2, %s3
  %s5 = sld [smem:[#allocation0]]
  $region30: #{tpu_custom_call.1} parent=0
    _
  %s7 = ssub.s32 1, %s5
  %s8 = scalar_select 0, %s7, %s5
  $region1: #{tpu_custom_call.1} parent=0
    #allocation2 [shape = 'u8[12288]{0}', space=vmem, size = 0x3000, scoped, tag = 'input window, operand 0, single buffered']
    #allocation3 [shape = 's32[1]{0}', space=sflag, size = 0x4, scoped, tag = 'scoped memory for tpu_custom_call.1']
    #allocation4 [shape = 's32[1]{0}', space=sflag, size = 0x4, scoped, tag = 'scoped memory for tpu_custom_call.1']
    #allocation5 [shape = 'u8[12288]{0}', space=vmem, size = 0x3000, scoped, tag = 'output window, operand 0, single buffered']
    #allocation6 [shape = 'u8[12288]{0}', space=vmem, size = 0x3000, scoped, tag = 'output window, operand 1, single buffered']
    #allocation7 [shape = 's32[1]{0}', space=sflag, size = 0x4, scoped, tag = 'scoped memory for tpu_custom_call.1']
    %9 = vsyncpa [#allocation3], 0
    %10 = vsyncpa [#allocation4], 0
    %11 = vsyncpa [#allocation7], 0
    // Predicated region
    $region2: #{tpu_custom_call.1} parent=1 // pred_check
      _
    $region3: #{tpu_custom_call.1} parent=1 // pred_check_branch
      %13 = sbr.rel (0) target = $region5
    $region4: #{tpu_custom_call.1} parent=1 // pred_region
      %s15 = ssub.s32 384, 384
      %16 = vsyncadd [#allocation3], %s15
      %s17 = sshll.u32 [#allocation2], 4
      %s18 = int_to_ptr.vmem [resolvable:$true] %s17
      %23 = dma.hbm_to_vmem [thread:$0]  %s0, 384, %s18, [#allocation3], 128, 128, 8
    $region5: #{tpu_custom_call.1} parent=1 // pred_fallthru
      _
    // Predicated region
    $region6: #{tpu_custom_call.1} parent=1 // pred_check
      _
    $region7: #{tpu_custom_call.1} parent=1 // pred_check_branch
      %25 = sbr.rel (0) target = $region9
    $region8: #{tpu_custom_call.1} parent=1 // pred_region
      _
    $region9: #{tpu_custom_call.1} parent=1 // pred_fallthru
      _
    // Predicated region
    $region10: #{tpu_custom_call.1} parent=1 // pred_check
      _
    $region11: #{tpu_custom_call.1} parent=1 // pred_check_branch
      %27 = sbr.rel (0) target = $region13
    $region12: #{tpu_custom_call.1} parent=1 // pred_region
      %28 = dma.done [#allocation3], 384
    $region13: #{tpu_custom_call.1} parent=1 // pred_fallthru
      _
    %v29 = vld [vmem:[#allocation2] sm:$0xff]
    %v30 = vld [vmem:[#allocation2 + $0x8] sm:$0xff]
    %v31 = vld [vmem:[#allocation2 + $0x10] sm:$0xff]
    %v32 = vld [vmem:[%s1] sm:$0x1]
    %vm33 = vcmp.eq.f32.partialorder %v29, 1.0
    %vm34 = vcmp.eq.f32.partialorder %v30, 1.0
    %vm35 = vcmp.eq.f32.partialorder %v31, 1.0
    %v37 = vlaneseq
    %v38 = vshrl.u32 %v37, 7
    %v39 = vsub.s32 0, %v38
    %v40 = vrot.slane %v32, %v39
    %v42 = vmul.f32 %v29, %v40
    %v43 = vmul.f32 %v30, %v40
    %v44 = vmul.f32 %v31, %v40
    %v45 = vsel %vm33, %v42, -inf
    %v46 = vsel %vm34, %v43, -inf
    %v47 = vsel %vm35, %v44, -inf
    %48 = vmax.xlane.f32.xlu0 %v45
    %v49 = vpop.xlane.xlu0 %48
    %50 = vmax.xlane.f32.xlu0 %v46
    %v51 = vpop.xlane.xlu0 %50
    %52 = vmax.xlane.f32.xlu0 %v47
    %v53 = vpop.xlane.xlu0 %52
    %v54 = vsub.f32 %v45, %v49
    %v55 = vsub.f32 %v46, %v51
    %v56 = vsub.f32 %v47, %v53
    %v57 = vmul.f32 %v54, 1.442695
    %v58 = vpow.pop %v57
    %v59 = vmul.f32 %v55, 1.442695
    %v60 = vpow.pop %v59
    %v61 = vmul.f32 %v56, 1.442695
    %v62 = vpow.pop %v61
    %63 = vadd.xlane.f32.xlu0 %v58
    %v64 = vpop.xlane.xlu0 %63
    %65 = vadd.xlane.f32.xlu0 %v60
    %v66 = vpop.xlane.xlu0 %65
    %67 = vadd.xlane.f32.xlu0 %v62
    %v68 = vpop.xlane.xlu0 %67
    %v69 = vrcp.pop %v64
    %v70 = vmul.f32 %v58, %v69
    %v71 = vrcp.pop %v66
    %v72 = vmul.f32 %v60, %v71
    %v73 = vrcp.pop %v68
    %v74 = vmul.f32 %v62, %v73
    %75 = vst [vmem:[#allocation5] sm:$0xff] %v70
    %76 = vst [vmem:[#allocation5 + $0x8] sm:$0xff] %v72
    %77 = vst [vmem:[#allocation5 + $0x10] sm:$0xff] %v74
    %78 = vst [vmem:[#allocation6] sm:$0xff] %v42
    %79 = vst [vmem:[#allocation6 + $0x8] sm:$0xff] %v43
    %80 = vst [vmem:[#allocation6 + $0x10] sm:$0xff] %v44
    // Predicated region
    $region14: #{tpu_custom_call.1} parent=1 // pred_check
      _
    $region15: #{tpu_custom_call.1} parent=1 // pred_check_branch
      %82 = sbr.rel (0) target = $region17
    $region16: #{tpu_custom_call.1} parent=1 // pred_region
      %s84 = ssub.s32 384, 384
      %85 = vsyncadd [#allocation4], %s84
      %s86 = sshll.u32 [#allocation5], 4
      %s87 = int_to_ptr.vmem [resolvable:$true] %s86
      %92 = dma.vmem_to_hbm [thread:$0]  %s87, 384, %s2, [#allocation4], 128, 128, 8
    $region17: #{tpu_custom_call.1} parent=1 // pred_fallthru
      _
    // Predicated region
    $region18: #{tpu_custom_call.1} parent=1 // pred_check
      _
    $region19: #{tpu_custom_call.1} parent=1 // pred_check_branch
      %94 = sbr.rel (0) target = $region21
    $region20: #{tpu_custom_call.1} parent=1 // pred_region
      %s96 = ssub.s32 384, 384
      %97 = vsyncadd [#allocation7], %s96
      %s98 = sshll.u32 [#allocation6], 4
      %s99 = int_to_ptr.vmem [resolvable:$true] %s98
      %104 = dma.vmem_to_hbm [thread:$0]  %s99, 384, %s3, [#allocation7], 128, 128, 8
    $region21: #{tpu_custom_call.1} parent=1 // pred_fallthru
      _
    // Predicated region
    $region22: #{tpu_custom_call.1} parent=1 // pred_check
      _
    $region23: #{tpu_custom_call.1} parent=1 // pred_check_branch
      %106 = sbr.rel (0) target = $region25
    $region24: #{tpu_custom_call.1} parent=1 // pred_region
      %107 = dma.done [#allocation4], 384
    $region25: #{tpu_custom_call.1} parent=1 // pred_fallthru
      _
    // Predicated region
    $region26: #{tpu_custom_call.1} parent=1 // pred_check
      _
    $region27: #{tpu_custom_call.1} parent=1 // pred_check_branch
      %109 = sbr.rel (0) target = $region29
    $region28: #{tpu_custom_call.1} parent=1 // pred_region
      %110 = dma.done [#allocation7], 384
    $region29: #{tpu_custom_call.1} parent=1 // pred_fallthru
      _
    %111 = vsyncpa [#allocation3], 1
    %112 = vsyncpa [#allocation4], 1
    %113 = vsyncpa [#allocation7], 1

</llo_original>
